<compile_context>
chip_gen: v7x
topology: tpu7x:2x2x1
jax: 0.10.0
libtpu: 0.0.40
codegen_flags: <defaults>
</compile_context>

<pallas_src>
import functools

import jax
import jax.numpy as jnp
from jax.experimental import pallas as pl
from jax.experimental.pallas import tpu as pltpu


def _fc_single_kernel(x_ref, w_ref, b_ref, o_ref):
    """Single-shot FC: o = x @ w + b (one MXU push, f32 accumulate)."""
    o_ref[...] = (
        jnp.dot(x_ref[...], w_ref[...], preferred_element_type=jnp.float32)
        + b_ref[...]
    ).astype(o_ref.dtype)


def _fc_ktiled_kernel(x_ref, w_ref, b_ref, o_ref, acc_ref):
    """K-tiled fallback for large flatten sizes: accumulate over the K grid axis."""
    k = pl.program_id(0)

    @pl.when(k == 0)
    def _():
        acc_ref[...] = jnp.zeros_like(acc_ref)

    acc_ref[...] += jnp.dot(
        x_ref[...], w_ref[...], preferred_element_type=jnp.float32
    )

    @pl.when(k == pl.num_programs(0) - 1)
    def _():
        o_ref[...] = (acc_ref[...] + b_ref[...]).astype(o_ref.dtype)


def roi_to_gcn_feature_mapper(
    x,
    weight_t,
    bias,
    num_nodes,
    node_features,
    *,
    vmem_budget_bytes=16 * 1024 * 1024,  # conservative across v5e/v6e/v7x scoped defaults
):
    """x: (B, C, H, W); weight_t: (K, N) = torch weight.T; bias: (N,).

    Returns (B, num_nodes, node_features) float32, matching the torch module.
    """
    B = x.shape[0]
    K, N = weight_t.shape
    assert N == num_nodes * node_features
    flat = 1
    for d in x.shape[1:]:
        flat *= d
    assert flat == K, f"flatten size mismatch: {flat} vs {K}"

    x2d = x.reshape(B, K)          # torch .view(batch, -1) on contiguous NCHW
    bias2d = bias.reshape(1, N)

    x_bytes = jnp.dtype(x2d.dtype).itemsize
    w_bytes = jnp.dtype(weight_t.dtype).itemsize
    cost = pl.CostEstimate(
        flops=2 * B * K * N,
        bytes_accessed=B * K * x_bytes + K * N * w_bytes + N * 4 + B * N * 4,
        transcendentals=0,
    )

    resident_bytes = B * K * x_bytes + K * N * w_bytes + N * 4 + B * N * 4

    if resident_bytes <= vmem_budget_bytes:
        # Fast path: grid-free, whole operands resident in VMEM, single MXU push.
        out = pl.pallas_call(
            _fc_single_kernel,
            out_shape=jax.ShapeDtypeStruct((B, N), jnp.float32),
            in_specs=[
                pl.BlockSpec(memory_space=pltpu.MemorySpace.VMEM),  # x (B, K)
                pl.BlockSpec(memory_space=pltpu.MemorySpace.VMEM),  # w (K, N)
                pl.BlockSpec(memory_space=pltpu.MemorySpace.VMEM),  # b (1, N)
            ],
            out_specs=pl.BlockSpec(memory_space=pltpu.MemorySpace.VMEM),
            cost_estimate=cost,
        )(x2d, weight_t, bias2d)
        return out.reshape(B, num_nodes, node_features)

    # Fallback (large K, e.g. the module's defaults): tile the reduction axis,
    # double-buffered weight slabs, f32 VMEM accumulator, init/finalize phases.
    tk = K
    while (
        tk % 2 == 0
        and tk > 128
        and (2 * (B * tk * x_bytes + tk * N * w_bytes) + N * 4 + 2 * B * N * 4)
        > vmem_budget_bytes
    ):
        tk //= 2
    assert K % tk == 0 and (tk == K or tk % 128 == 0), (
        "K-tiled fallback needs a 128-aligned divisor of K"
    )

    out = pl.pallas_call(
        _fc_ktiled_kernel,
        out_shape=jax.ShapeDtypeStruct((B, N), jnp.float32),
        grid_spec=pltpu.PrefetchScalarGridSpec(
            num_scalar_prefetch=0,
            grid=(K // tk,),
            in_specs=[
                pl.BlockSpec((B, tk), lambda k: (0, k)),   # activation K-slab
                pl.BlockSpec((tk, N), lambda k: (k, 0)),   # weight K-slab (full N)
                pl.BlockSpec((1, N), lambda k: (0, 0)),    # bias, resident
            ],
            out_specs=pl.BlockSpec((B, N), lambda k: (0, 0)),  # output resident across K
            scratch_shapes=[pltpu.VMEM((B, N), jnp.float32)],
        ),
        compiler_params=pltpu.CompilerParams(
            dimension_semantics=("arbitrary",),
            vmem_limit_bytes=min(2 * vmem_budget_bytes, 48 * 1024 * 1024),
        ),
        cost_estimate=cost,
    )(x2d, weight_t, bias2d)
    return out.reshape(B, num_nodes, node_features)


if __name__ == "__main__":
    # Small shapes consistent with the module's forward:
    #   input_channels=4, input_height=16, input_width=16 -> K = 1024
    #   num_nodes=8, node_features=32 -> N = 256
    B, C, H, W = 2, 4, 16, 16
    num_nodes, node_features = 8, 32
    K = C * H * W
    N = num_nodes * node_features

    key = jax.random.PRNGKey(0)
    kx, kw, kb = jax.random.split(key, 3)

    x = jax.random.normal(kx, (B, C, H, W), dtype=jnp.float32)
    # torch stores the Linear weight as (N, K); we keep W^T = (K, N).
    bound = 1.0 / (K ** 0.5)
    weight_t = jax.random.uniform(kw, (K, N), dtype=jnp.float32, minval=-bound, maxval=bound)
    bias = jax.random.uniform(kb, (N,), dtype=jnp.float32, minval=-bound, maxval=bound)

    fn = jax.jit(
        functools.partial(
            roi_to_gcn_feature_mapper,
            num_nodes=num_nodes,
            node_features=node_features,
        )
    )
    out = fn(x, weight_t, bias)
    jax.block_until_ready(out)

    # Reference in plain JAX: same math as torch.nn.Linear on the flattened input.
    ref = (x.reshape(B, K) @ weight_t + bias).reshape(B, num_nodes, node_features)

    assert out.shape == (B, num_nodes, node_features)
    assert out.dtype == jnp.float32
    assert jnp.allclose(out, ref, atol=5e-2, rtol=5e-2), float(jnp.max(jnp.abs(out - ref)))

    print("KERNEL_OK")
</pallas_src>

<mosaic_0001>
module attributes {stable_mosaic.version = 11 : i64} {
  func.func @_fc_single_kernel(%arg0: memref<2x1024xf32, #tpu.memory_space<vmem>>, %arg1: memref<1024x256xf32, #tpu.memory_space<vmem>>, %arg2: memref<1x256xf32, #tpu.memory_space<vmem>>, %arg3: memref<2x256xf32, #tpu.memory_space<vmem>>) attributes {dimension_semantics = [], scalar_prefetch = 0 : i64, scratch_operands = 0 : i64, tpu.core_type = #tpu.core_type<tc>} {
    %c0 = arith.constant 0 : index
    %c0_0 = arith.constant 0 : index
    %0 = vector.load %arg0[%c0, %c0_0] : memref<2x1024xf32, #tpu.memory_space<vmem>>, vector<2x1024xf32>
    %c0_1 = arith.constant 0 : index
    %c0_2 = arith.constant 0 : index
    %1 = vector.load %arg1[%c0_1, %c0_2] : memref<1024x256xf32, #tpu.memory_space<vmem>>, vector<1024x256xf32>
    %cst = arith.constant dense<0.000000e+00> : vector<2x256xf32>
    %2 = tpu.matmul %0, %1, %cst {dimension_numbers = #tpu.dot_dimension_numbers<[1], [0], [0], [1], [0, 0, 1, 1], [], []>} : vector<2x1024xf32>, vector<1024x256xf32>, vector<2x256xf32> -> vector<2x256xf32>
    %c0_3 = arith.constant 0 : index
    %c0_4 = arith.constant 0 : index
    %3 = vector.load %arg2[%c0_3, %c0_4] : memref<1x256xf32, #tpu.memory_space<vmem>>, vector<1x256xf32>
    %4 = vector.broadcast %3 : vector<1x256xf32> to vector<2x256xf32>
    %5 = arith.addf %2, %4 : vector<2x256xf32>
    %c0_5 = arith.constant 0 : index
    %c0_6 = arith.constant 0 : index
    %6 = vector.load %arg3[%c0_5, %c0_6] : memref<2x256xf32, #tpu.memory_space<vmem>>, vector<2x256xf32>
    tpu.vector_store %arg3[%c0_5, %c0_6], %5 {strides = array<i32>} : memref<2x256xf32, #tpu.memory_space<vmem>>, vector<2x256xf32>,
    return
  }
}

</mosaic_0001>

<llo_original>
// kernel: roi_to_gcn_feature_mapper.1
$region0: #{roi_to_gcn_feature_mapper.1}
  #allocation0 [shape = 'u32[]', space=smem, size = 0x4, offset = 0x4, fixed_abs, tag = 'smem constant byte address 0x4 - core index']
  #allocation1 [shape = 'u32[144,128]{1,0:T(1,128)}', space=vmem, size = 0x12000, scoped, tag = 'internal scratch']
  %s0 = inlined_call_operand.vmem [shape: f32[2,1024], index: 0, kind: input, shape index: {}]
  %s1 = inlined_call_operand.hbm [shape: f32[1024,256], index: 1, kind: input, shape index: {}]
  %s2 = inlined_call_operand.vmem [shape: f32[1,256], index: 2, kind: input, shape index: {}]
  %s3 = inlined_call_operand.vmem [shape: f32[2,256], index: 3, kind: output, shape index: {}]
  %s4 = sld [smem:[#allocation0]]
  $region26: #{roi_to_gcn_feature_mapper.1} parent=0
    _
  %s6 = ssub.s32 1, %s4
  %s7 = scalar_select 0, %s6, %s4
  $region1: #{roi_to_gcn_feature_mapper.1} parent=0
    #allocation2 [shape = 'u8[1048576]{0}', space=vmem, size = 0x100000, scoped, tag = 'input window, operand 1, single buffered']
    #allocation3 [shape = 's32[1]{0}', space=sflag, size = 0x4, scoped, tag = 'scoped memory for roi_to_gcn_feature_mapper.1']
    %8 = vsyncpa [#allocation3], 0
    // Predicated region
    $region2: #{roi_to_gcn_feature_mapper.1} parent=1 // pred_check
      _
    $region3: #{roi_to_gcn_feature_mapper.1} parent=1 // pred_check_branch
      %10 = sbr.rel (0) target = $region5
    $region4: #{roi_to_gcn_feature_mapper.1} parent=1 // pred_region
      _
    $region5: #{roi_to_gcn_feature_mapper.1} parent=1 // pred_fallthru
      _
    // Predicated region
    $region6: #{roi_to_gcn_feature_mapper.1} parent=1 // pred_check
      _
    $region7: #{roi_to_gcn_feature_mapper.1} parent=1 // pred_check_branch
      %12 = sbr.rel (0) target = $region9
    $region8: #{roi_to_gcn_feature_mapper.1} parent=1 // pred_region
      %s14 = ssub.s32 32768, 32768
      %15 = vsyncadd [#allocation3], %s14
      %s16 = sshll.u32 [#allocation2], 4
      %s17 = int_to_ptr.vmem [resolvable:$true] %s16
      %22 = dma.hbm_to_vmem [thread:$0]  %s1, 32768, %s17, [#allocation3], 256, 256, 16
    $region9: #{roi_to_gcn_feature_mapper.1} parent=1 // pred_fallthru
      _
    // Predicated region
    $region10: #{roi_to_gcn_feature_mapper.1} parent=1 // pred_check
      _
    $region11: #{roi_to_gcn_feature_mapper.1} parent=1 // pred_check_branch
      %24 = sbr.rel (0) target = $region13
    $region12: #{roi_to_gcn_feature_mapper.1} parent=1 // pred_region
      _
    $region13: #{roi_to_gcn_feature_mapper.1} parent=1 // pred_fallthru
      _
    // Predicated region
    $region14: #{roi_to_gcn_feature_mapper.1} parent=1 // pred_check
      _
    $region15: #{roi_to_gcn_feature_mapper.1} parent=1 // pred_check_branch
      %26 = sbr.rel (0) target = $region17
    $region16: #{roi_to_gcn_feature_mapper.1} parent=1 // pred_region
      %27 = dma.done [#allocation3], 32768
    $region17: #{roi_to_gcn_feature_mapper.1} parent=1 // pred_fallthru
      _
    %v28 = vld [vmem:[%s0] sm:$0xff]
    %v29 = vld [vmem:[%s0 + $0x8] sm:$0xff]
    %v30 = vld [vmem:[#allocation2] sm:$0xff]
    %v31 = vld [vmem:[#allocation2 + $0x8] sm:$0xff]
    %v32 = vld [vmem:[#allocation2 + $0x10] sm:$0xff]
    %v33 = vld [vmem:[#allocation2 + $0x18] sm:$0xff]
    %v34 = vld [vmem:[#allocation2 + $0x20] sm:$0xff]
    %v35 = vld [vmem:[#allocation2 + $0x28] sm:$0xff]
    %v36 = vld [vmem:[#allocation2 + $0x30] sm:$0xff]
    %v37 = vld [vmem:[#allocation2 + $0x38] sm:$0xff]
    %v38 = vld [vmem:[#allocation2 + $0x40] sm:$0xff]
    %v39 = vld [vmem:[#allocation2 + $0x48] sm:$0xff]
    %v40 = vld [vmem:[#allocation2 + $0x50] sm:$0xff]
    %v41 = vld [vmem:[#allocation2 + $0x58] sm:$0xff]
    %v42 = vld [vmem:[#allocation2 + $0x60] sm:$0xff]
    %v43 = vld [vmem:[#allocation2 + $0x68] sm:$0xff]
    %v44 = vld [vmem:[#allocation2 + $0x70] sm:$0xff]
    %v45 = vld [vmem:[#allocation2 + $0x78] sm:$0xff]
    %v46 = vld [vmem:[#allocation2 + $0x80] sm:$0xff]
    %v47 = vld [vmem:[#allocation2 + $0x88] sm:$0xff]
    %v48 = vld [vmem:[#allocation2 + $0x90] sm:$0xff]
    %v49 = vld [vmem:[#allocation2 + $0x98] sm:$0xff]
    %v50 = vld [vmem:[#allocation2 + $0xa0] sm:$0xff]
    %v51 = vld [vmem:[#allocation2 + $0xa8] sm:$0xff]
    %v52 = vld [vmem:[#allocation2 + $0xb0] sm:$0xff]
    %v53 = vld [vmem:[#allocation2 + $0xb8] sm:$0xff]
    %v54 = vld [vmem:[#allocation2 + $0xc0] sm:$0xff]
    %v55 = vld [vmem:[#allocation2 + $0xc8] sm:$0xff]
    %v56 = vld [vmem:[#allocation2 + $0xd0] sm:$0xff]
    %v57 = vld [vmem:[#allocation2 + $0xd8] sm:$0xff]
    %v58 = vld [vmem:[#allocation2 + $0xe0] sm:$0xff]
    %v59 = vld [vmem:[#allocation2 + $0xe8] sm:$0xff]
    %v60 = vld [vmem:[#allocation2 + $0xf0] sm:$0xff]
    %v61 = vld [vmem:[#allocation2 + $0xf8] sm:$0xff]
    %v62 = vld [vmem:[#allocation2 + $0x100] sm:$0xff]
    %v63 = vld [vmem:[#allocation2 + $0x108] sm:$0xff]
    %v64 = vld [vmem:[#allocation2 + $0x110] sm:$0xff]
    %v65 = vld [vmem:[#allocation2 + $0x118] sm:$0xff]
    %v66 = vld [vmem:[#allocation2 + $0x120] sm:$0xff]
    %v67 = vld [vmem:[#allocation2 + $0x128] sm:$0xff]
    %v68 = vld [vmem:[#allocation2 + $0x130] sm:$0xff]
    %v69 = vld [vmem:[#allocation2 + $0x138] sm:$0xff]
    %v70 = vld [vmem:[#allocation2 + $0x140] sm:$0xff]
    %v71 = vld [vmem:[#allocation2 + $0x148] sm:$0xff]
    %v72 = vld [vmem:[#allocation2 + $0x150] sm:$0xff]
    %v73 = vld [vmem:[#allocation2 + $0x158] sm:$0xff]
    %v74 = vld [vmem:[#allocation2 + $0x160] sm:$0xff]
    %v75 = vld [vmem:[#allocation2 + $0x168] sm:$0xff]
    %v76 = vld [vmem:[#allocation2 + $0x170] sm:$0xff]
    %v77 = vld [vmem:[#allocation2 + $0x178] sm:$0xff]
    %v78 = vld [vmem:[#allocation2 + $0x180] sm:$0xff]
    %v79 = vld [vmem:[#allocation2 + $0x188] sm:$0xff]
    %v80 = vld [vmem:[#allocation2 + $0x190] sm:$0xff]
    %v81 = vld [vmem:[#allocation2 + $0x198] sm:$0xff]
    %v82 = vld [vmem:[#allocation2 + $0x1a0] sm:$0xff]
    %v83 = vld [vmem:[#allocation2 + $0x1a8] sm:$0xff]
    %v84 = vld [vmem:[#allocation2 + $0x1b0] sm:$0xff]
    %v85 = vld [vmem:[#allocation2 + $0x1b8] sm:$0xff]
    %v86 = vld [vmem:[#allocation2 + $0x1c0] sm:$0xff]
    %v87 = vld [vmem:[#allocation2 + $0x1c8] sm:$0xff]
    %v88 = vld [vmem:[#allocation2 + $0x1d0] sm:$0xff]
    %v89 = vld [vmem:[#allocation2 + $0x1d8] sm:$0xff]
    %v90 = vld [vmem:[#allocation2 + $0x1e0] sm:$0xff]
    %v91 = vld [vmem:[#allocation2 + $0x1e8] sm:$0xff]
    %v92 = vld [vmem:[#allocation2 + $0x1f0] sm:$0xff]
    %v93 = vld [vmem:[#allocation2 + $0x1f8] sm:$0xff]
    %v94 = vld [vmem:[#allocation2 + $0x200] sm:$0xff]
    %v95 = vld [vmem:[#allocation2 + $0x208] sm:$0xff]
    %v96 = vld [vmem:[#allocation2 + $0x210] sm:$0xff]
    %v97 = vld [vmem:[#allocation2 + $0x218] sm:$0xff]
    %v98 = vld [vmem:[#allocation2 + $0x220] sm:$0xff]
    %v99 = vld [vmem:[#allocation2 + $0x228] sm:$0xff]
    %v100 = vld [vmem:[#allocation2 + $0x230] sm:$0xff]
    %v101 = vld [vmem:[#allocation2 + $0x238] sm:$0xff]
    %v102 = vld [vmem:[#allocation2 + $0x240] sm:$0xff]
    %v103 = vld [vmem:[#allocation2 + $0x248] sm:$0xff]
    %v104 = vld [vmem:[#allocation2 + $0x250] sm:$0xff]
    %v105 = vld [vmem:[#allocation2 + $0x258] sm:$0xff]
    %v106 = vld [vmem:[#allocation2 + $0x260] sm:$0xff]
    %v107 = vld [vmem:[#allocation2 + $0x268] sm:$0xff]
    %v108 = vld [vmem:[#allocation2 + $0x270] sm:$0xff]
    %v109 = vld [vmem:[#allocation2 + $0x278] sm:$0xff]
    %v110 = vld [vmem:[#allocation2 + $0x280] sm:$0xff]
    %v111 = vld [vmem:[#allocation2 + $0x288] sm:$0xff]
    %v112 = vld [vmem:[#allocation2 + $0x290] sm:$0xff]
    %v113 = vld [vmem:[#allocation2 + $0x298] sm:$0xff]
    %v114 = vld [vmem:[#allocation2 + $0x2a0] sm:$0xff]
    %v115 = vld [vmem:[#allocation2 + $0x2a8] sm:$0xff]
    %v116 = vld [vmem:[#allocation2 + $0x2b0] sm:$0xff]
    %v117 = vld [vmem:[#allocation2 + $0x2b8] sm:$0xff]
    %v118 = vld [vmem:[#allocation2 + $0x2c0] sm:$0xff]
    %v119 = vld [vmem:[#allocation2 + $0x2c8] sm:$0xff]
    %v120 = vld [vmem:[#allocation2 + $0x2d0] sm:$0xff]
    %v121 = vld [vmem:[#allocation2 + $0x2d8] sm:$0xff]
    %v122 = vld [vmem:[#allocation2 + $0x2e0] sm:$0xff]
    %v123 = vld [vmem:[#allocation2 + $0x2e8] sm:$0xff]
    %v124 = vld [vmem:[#allocation2 + $0x2f0] sm:$0xff]
    %v125 = vld [vmem:[#allocation2 + $0x2f8] sm:$0xff]
    %v126 = vld [vmem:[#allocation2 + $0x300] sm:$0xff]
    %v127 = vld [vmem:[#allocation2 + $0x308] sm:$0xff]
    %v128 = vld [vmem:[#allocation2 + $0x310] sm:$0xff]
    %v129 = vld [vmem:[#allocation2 + $0x318] sm:$0xff]
    %v130 = vld [vmem:[#allocation2 + $0x320] sm:$0xff]
    %v131 = vld [vmem:[#allocation2 + $0x328] sm:$0xff]
    %v132 = vld [vmem:[#allocation2 + $0x330] sm:$0xff]
    %v133 = vld [vmem:[#allocation2 + $0x338] sm:$0xff]
    %v134 = vld [vmem:[#allocation2 + $0x340] sm:$0xff]
    %v135 = vld [vmem:[#allocation2 + $0x348] sm:$0xff]
    %v136 = vld [vmem:[#allocation2 + $0x350] sm:$0xff]
    %v137 = vld [vmem:[#allocation2 + $0x358] sm:$0xff]
    %v138 = vld [vmem:[#allocation2 + $0x360] sm:$0xff]
    %v139 = vld [vmem:[#allocation2 + $0x368] sm:$0xff]
    %v140 = vld [vmem:[#allocation2 + $0x370] sm:$0xff]
    %v141 = vld [vmem:[#allocation2 + $0x378] sm:$0xff]
    %v142 = vld [vmem:[#allocation2 + $0x380] sm:$0xff]
    %v143 = vld [vmem:[#allocation2 + $0x388] sm:$0xff]
    %v144 = vld [vmem:[#allocation2 + $0x390] sm:$0xff]
    %v145 = vld [vmem:[#allocation2 + $0x398] sm:$0xff]
    %v146 = vld [vmem:[#allocation2 + $0x3a0] sm:$0xff]
    %v147 = vld [vmem:[#allocation2 + $0x3a8] sm:$0xff]
    %v148 = vld [vmem:[#allocation2 + $0x3b0] sm:$0xff]
    %v149 = vld [vmem:[#allocation2 + $0x3b8] sm:$0xff]
    %v150 = vld [vmem:[#allocation2 + $0x3c0] sm:$0xff]
    %v151 = vld [vmem:[#allocation2 + $0x3c8] sm:$0xff]
    %v152 = vld [vmem:[#allocation2 + $0x3d0] sm:$0xff]
    %v153 = vld [vmem:[#allocation2 + $0x3d8] sm:$0xff]
    %v154 = vld [vmem:[#allocation2 + $0x3e0] sm:$0xff]
    %v155 = vld [vmem:[#allocation2 + $0x3e8] sm:$0xff]
    %v156 = vld [vmem:[#allocation2 + $0x3f0] sm:$0xff]
    %v157 = vld [vmem:[#allocation2 + $0x3f8] sm:$0xff]
    %v158 = vld [vmem:[#allocation2 + $0x400] sm:$0xff]
    %v159 = vld [vmem:[#allocation2 + $0x408] sm:$0xff]
    %v160 = vld [vmem:[#allocation2 + $0x410] sm:$0xff]
    %v161 = vld [vmem:[#allocation2 + $0x418] sm:$0xff]
    %v162 = vld [vmem:[#allocation2 + $0x420] sm:$0xff]
    %v163 = vld [vmem:[#allocation2 + $0x428] sm:$0xff]
    %v164 = vld [vmem:[#allocation2 + $0x430] sm:$0xff]
    %v165 = vld [vmem:[#allocation2 + $0x438] sm:$0xff]
    %v166 = vld [vmem:[#allocation2 + $0x440] sm:$0xff]
    %v167 = vld [vmem:[#allocation2 + $0x448] sm:$0xff]
    %v168 = vld [vmem:[#allocation2 + $0x450] sm:$0xff]
    %v169 = vld [vmem:[#allocation2 + $0x458] sm:$0xff]
    %v170 = vld [vmem:[#allocation2 + $0x460] sm:$0xff]
    %v171 = vld [vmem:[#allocation2 + $0x468] sm:$0xff]
    %v172 = vld [vmem:[#allocation2 + $0x470] sm:$0xff]
    %v173 = vld [vmem:[#allocation2 + $0x478] sm:$0xff]
    %v174 = vld [vmem:[#allocation2 + $0x480] sm:$0xff]
    %v175 = vld [vmem:[#allocation2 + $0x488] sm:$0xff]
    %v176 = vld [vmem:[#allocation2 + $0x490] sm:$0xff]
    %v177 = vld [vmem:[#allocation2 + $0x498] sm:$0xff]
    %v178 = vld [vmem:[#allocation2 + $0x4a0] sm:$0xff]
    %v179 = vld [vmem:[#allocation2 + $0x4a8] sm:$0xff]
    %v180 = vld [vmem:[#allocation2 + $0x4b0] sm:$0xff]
    %v181 = vld [vmem:[#allocation2 + $0x4b8] sm:$0xff]
    %v182 = vld [vmem:[#allocation2 + $0x4c0] sm:$0xff]
    %v183 = vld [vmem:[#allocation2 + $0x4c8] sm:$0xff]
    %v184 = vld [vmem:[#allocation2 + $0x4d0] sm:$0xff]
    %v185 = vld [vmem:[#allocation2 + $0x4d8] sm:$0xff]
    %v186 = vld [vmem:[#allocation2 + $0x4e0] sm:$0xff]
    %v187 = vld [vmem:[#allocation2 + $0x4e8] sm:$0xff]
    %v188 = vld [vmem:[#allocation2 + $0x4f0] sm:$0xff]
    %v189 = vld [vmem:[#allocation2 + $0x4f8] sm:$0xff]
    %v190 = vld [vmem:[#allocation2 + $0x500] sm:$0xff]
    %v191 = vld [vmem:[#allocation2 + $0x508] sm:$0xff]
    %v192 = vld [vmem:[#allocation2 + $0x510] sm:$0xff]
    %v193 = vld [vmem:[#allocation2 + $0x518] sm:$0xff]
    %v194 = vld [vmem:[#allocation2 + $0x520] sm:$0xff]
    %v195 = vld [vmem:[#allocation2 + $0x528] sm:$0xff]
    %v196 = vld [vmem:[#allocation2 + $0x530] sm:$0xff]
    %v197 = vld [vmem:[#allocation2 + $0x538] sm:$0xff]
    %v198 = vld [vmem:[#allocation2 + $0x540] sm:$0xff]
    %v199 = vld [vmem:[#allocation2 + $0x548] sm:$0xff]
    %v200 = vld [vmem:[#allocation2 + $0x550] sm:$0xff]
    %v201 = vld [vmem:[#allocation2 + $0x558] sm:$0xff]
    %v202 = vld [vmem:[#allocation2 + $0x560] sm:$0xff]
    %v203 = vld [vmem:[#allocation2 + $0x568] sm:$0xff]
    %v204 = vld [vmem:[#allocation2 + $0x570] sm:$0xff]
    %v205 = vld [vmem:[#allocation2 + $0x578] sm:$0xff]
    %v206 = vld [vmem:[#allocation2 + $0x580] sm:$0xff]
    %v207 = vld [vmem:[#allocation2 + $0x588] sm:$0xff]
    %v208 = vld [vmem:[#allocation2 + $0x590] sm:$0xff]
    %v209 = vld [vmem:[#allocation2 + $0x598] sm:$0xff]
    %v210 = vld [vmem:[#allocation2 + $0x5a0] sm:$0xff]
    %v211 = vld [vmem:[#allocation2 + $0x5a8] sm:$0xff]
    %v212 = vld [vmem:[#allocation2 + $0x5b0] sm:$0xff]
    %v213 = vld [vmem:[#allocation2 + $0x5b8] sm:$0xff]
    %v214 = vld [vmem:[#allocation2 + $0x5c0] sm:$0xff]
    %v215 = vld [vmem:[#allocation2 + $0x5c8] sm:$0xff]
    %v216 = vld [vmem:[#allocation2 + $0x5d0] sm:$0xff]
    %v217 = vld [vmem:[#allocation2 + $0x5d8] sm:$0xff]
    %v218 = vld [vmem:[#allocation2 + $0x5e0] sm:$0xff]
    %v219 = vld [vmem:[#allocation2 + $0x5e8] sm:$0xff]
    %v220 = vld [vmem:[#allocation2 + $0x5f0] sm:$0xff]
    %v221 = vld [vmem:[#allocation2 + $0x5f8] sm:$0xff]
    %v222 = vld [vmem:[#allocation2 + $0x600] sm:$0xff]
    %v223 = vld [vmem:[#allocation2 + $0x608] sm:$0xff]
    %v224 = vld [vmem:[#allocation2 + $0x610] sm:$0xff]
    %v225 = vld [vmem:[#allocation2 + $0x618] sm:$0xff]
    %v226 = vld [vmem:[#allocation2 + $0x620] sm:$0xff]
    %v227 = vld [vmem:[#allocation2 + $0x628] sm:$0xff]
    %v228 = vld [vmem:[#allocation2 + $0x630] sm:$0xff]
    %v229 = vld [vmem:[#allocation2 + $0x638] sm:$0xff]
    %v230 = vld [vmem:[#allocation2 + $0x640] sm:$0xff]
    %v231 = vld [vmem:[#allocation2 + $0x648] sm:$0xff]
    %v232 = vld [vmem:[#allocation2 + $0x650] sm:$0xff]
    %v233 = vld [vmem:[#allocation2 + $0x658] sm:$0xff]
    %v234 = vld [vmem:[#allocation2 + $0x660] sm:$0xff]
    %v235 = vld [vmem:[#allocation2 + $0x668] sm:$0xff]
    %v236 = vld [vmem:[#allocation2 + $0x670] sm:$0xff]
    %v237 = vld [vmem:[#allocation2 + $0x678] sm:$0xff]
    %v238 = vld [vmem:[#allocation2 + $0x680] sm:$0xff]
    %v239 = vld [vmem:[#allocation2 + $0x688] sm:$0xff]
    %v240 = vld [vmem:[#allocation2 + $0x690] sm:$0xff]
    %v241 = vld [vmem:[#allocation2 + $0x698] sm:$0xff]
    %v242 = vld [vmem:[#allocation2 + $0x6a0] sm:$0xff]
    %v243 = vld [vmem:[#allocation2 + $0x6a8] sm:$0xff]
    %v244 = vld [vmem:[#allocation2 + $0x6b0] sm:$0xff]
    %v245 = vld [vmem:[#allocation2 + $0x6b8] sm:$0xff]
    %v246 = vld [vmem:[#allocation2 + $0x6c0] sm:$0xff]
    %v247 = vld [vmem:[#allocation2 + $0x6c8] sm:$0xff]
    %v248 = vld [vmem:[#allocation2 + $0x6d0] sm:$0xff]
    %v249 = vld [vmem:[#allocation2 + $0x6d8] sm:$0xff]
    %v250 = vld [vmem:[#allocation2 + $0x6e0] sm:$0xff]
    %v251 = vld [vmem:[#allocation2 + $0x6e8] sm:$0xff]
    %v252 = vld [vmem:[#allocation2 + $0x6f0] sm:$0xff]
    %v253 = vld [vmem:[#allocation2 + $0x6f8] sm:$0xff]
    %v254 = vld [vmem:[#allocation2 + $0x700] sm:$0xff]
    %v255 = vld [vmem:[#allocation2 + $0x708] sm:$0xff]
    %v256 = vld [vmem:[#allocation2 + $0x710] sm:$0xff]
    %v257 = vld [vmem:[#allocation2 + $0x718] sm:$0xff]
    %v258 = vld [vmem:[#allocation2 + $0x720] sm:$0xff]
    %v259 = vld [vmem:[#allocation2 + $0x728] sm:$0xff]
    %v260 = vld [vmem:[#allocation2 + $0x730] sm:$0xff]
    %v261 = vld [vmem:[#allocation2 + $0x738] sm:$0xff]
    %v262 = vld [vmem:[#allocation2 + $0x740] sm:$0xff]
    %v263 = vld [vmem:[#allocation2 + $0x748] sm:$0xff]
    %v264 = vld [vmem:[#allocation2 + $0x750] sm:$0xff]
    %v265 = vld [vmem:[#allocation2 + $0x758] sm:$0xff]
    %v266 = vld [vmem:[#allocation2 + $0x760] sm:$0xff]
    %v267 = vld [vmem:[#allocation2 + $0x768] sm:$0xff]
    %v268 = vld [vmem:[#allocation2 + $0x770] sm:$0xff]
    %v269 = vld [vmem:[#allocation2 + $0x778] sm:$0xff]
    %v270 = vld [vmem:[#allocation2 + $0x780] sm:$0xff]
    %v271 = vld [vmem:[#allocation2 + $0x788] sm:$0xff]
    %v272 = vld [vmem:[#allocation2 + $0x790] sm:$0xff]
    %v273 = vld [vmem:[#allocation2 + $0x798] sm:$0xff]
    %v274 = vld [vmem:[#allocation2 + $0x7a0] sm:$0xff]
    %v275 = vld [vmem:[#allocation2 + $0x7a8] sm:$0xff]
    %v276 = vld [vmem:[#allocation2 + $0x7b0] sm:$0xff]
    %v277 = vld [vmem:[#allocation2 + $0x7b8] sm:$0xff]
    %v278 = vld [vmem:[#allocation2 + $0x7c0] sm:$0xff]
    %v279 = vld [vmem:[#allocation2 + $0x7c8] sm:$0xff]
    %v280 = vld [vmem:[#allocation2 + $0x7d0] sm:$0xff]
    %v281 = vld [vmem:[#allocation2 + $0x7d8] sm:$0xff]
    %v282 = vld [vmem:[#allocation2 + $0x7e0] sm:$0xff]
    %v283 = vld [vmem:[#allocation2 + $0x7e8] sm:$0xff]
    %v284 = vld [vmem:[#allocation2 + $0x7f0] sm:$0xff]
    %v285 = vld [vmem:[#allocation2 + $0x7f8] sm:$0xff]
    %v286 = vld [vmem:[%s2] sm:$0x3]
    %v288 = vlaneseq
    %v289 = vshrl.u32 %v288, 7
    %v290 = vsub.s32 0, %v289
    %v291 = vrot.slane %v286, %v290
    %v292 = vlaneseq
    %v293 = vshrl.u32 %v292, 7
    %v294 = vsub.s32 1, %v293
    %v295 = vrot.slane %v286, %v294
    %v300 = vcombine.high %v28, %v28
    %v302 = vunpack.c.l.s4 1983009808
    %v303 = vunpack.c.0.s8 %v302
    %v304 = vlaneseq
    %v305 = vshrl.u32 %v304, 7
    %v306 = vsub.s32 %v303, %v305
    %v307 = vrot.slane %v28, %v306
    %v309 = vunpack.c.l.s4 1983009808
    %v310 = vunpack.c.0.s8 %v309
    %v311 = vlaneseq
    %v312 = vshrl.u32 %v311, 7
    %v313 = vsub.s32 %v310, %v312
    %v314 = vrot.slane %v300, %v313
    %v315 = vcombine.high %v307, %v307
    %v316 = vcombine.high %v314, %v314
    %v317 = vcombine.high %v29, %v29
    %v319 = vunpack.c.l.s4 1983009808
    %v320 = vunpack.c.0.s8 %v319
    %v321 = vlaneseq
    %v322 = vshrl.u32 %v321, 7
    %v323 = vsub.s32 %v320, %v322
    %v324 = vrot.slane %v29, %v323
    %v326 = vunpack.c.l.s4 1983009808
    %v327 = vunpack.c.0.s8 %v326
    %v328 = vlaneseq
    %v329 = vshrl.u32 %v328, 7
    %v330 = vsub.s32 %v327, %v329
    %v331 = vrot.slane %v317, %v330
    %v332 = vcombine.high %v324, %v324
    %v333 = vcombine.high %v331, %v331
    %342 = vmatprep.subr.mxu0 %v31
    %343 = vmatpush1.msra.mxu0 %v30
    %344 = vmatprep.subr.mxu0 %v33
    %345 = vmatpush1.msra.mxu0 %v32
    %346 = vmatprep.subr.mxu0 %v35
    %347 = vmatpush1.msra.mxu0 %v34
    %348 = vmatprep.subr.mxu0 %v37
    %349 = vmatpush1.msra.mxu0 %v36
    %350 = vmatprep.subr.mxu0 %v39
    %351 = vmatpush1.msra.mxu0 %v38
    %352 = vmatprep.subr.mxu0 %v41
    %353 = vmatpush1.msra.mxu0 %v40
    %354 = vmatprep.subr.mxu0 %v43
    %355 = vmatpush1.msra.mxu0 %v42
    %356 = vmatprep.subr.mxu0 %v45
    %357 = vmatpush1.msra.mxu0 %v44
    %358 = vmatprep.subr.mxu0 %v47
    %359 = vmatpush1.msra.mxu0 %v46
    %360 = vmatprep.subr.mxu0 %v49
    %361 = vmatpush1.msra.mxu0 %v48
    %362 = vmatprep.subr.mxu0 %v51
    %363 = vmatpush1.msra.mxu0 %v50
    %364 = vmatprep.subr.mxu0 %v53
    %365 = vmatpush1.msra.mxu0 %v52
    %366 = vmatprep.subr.mxu0 %v55
    %367 = vmatpush1.msra.mxu0 %v54
    %368 = vmatprep.subr.mxu0 %v57
    %369 = vmatpush1.msra.mxu0 %v56
    %370 = vmatprep.subr.mxu0 %v59
    %371 = vmatpush1.msra.mxu0 %v58
    %372 = vmatprep.subr.mxu0 %v61
    %373 = vmatpush1.msra.mxu0 %v60
    %374 = vmatprep.subr.mxu0 %v63
    %375 = vmatpush1.msra.mxu0 %v62
    %376 = vmatprep.subr.mxu0 %v65
    %377 = vmatpush1.msra.mxu0 %v64
    %378 = vmatprep.subr.mxu0 %v67
    %379 = vmatpush1.msra.mxu0 %v66
    %380 = vmatprep.subr.mxu0 %v69
    %381 = vmatpush1.msra.mxu0 %v68
    %382 = vmatprep.subr.mxu0 %v71
    %383 = vmatpush1.msra.mxu0 %v70
    %384 = vmatprep.subr.mxu0 %v73
    %385 = vmatpush1.msra.mxu0 %v72
    %386 = vmatprep.subr.mxu0 %v75
    %387 = vmatpush1.msra.mxu0 %v74
    %388 = vmatprep.subr.mxu0 %v77
    %389 = vmatpush1.msra.mxu0 %v76
    %390 = vmatprep.subr.mxu0 %v79
    %391 = vmatpush1.msra.mxu0 %v78
    %392 = vmatprep.subr.mxu0 %v81
    %393 = vmatpush1.msra.mxu0 %v80
    %394 = vmatprep.subr.mxu0 %v83
    %395 = vmatpush1.msra.mxu0 %v82
    %396 = vmatprep.subr.mxu0 %v85
    %397 = vmatpush1.msra.mxu0 %v84
    %398 = vmatprep.subr.mxu0 %v87
    %399 = vmatpush1.msra.mxu0 %v86
    %400 = vmatprep.subr.mxu0 %v89
    %401 = vmatpush1.msra.mxu0 %v88
    %402 = vmatprep.subr.mxu0 %v91
    %403 = vmatpush1.msra.mxu0 %v90
    %404 = vmatprep.subr.mxu0 %v93
    %405 = vmatpush1.msra.mxu0 %v92
    %406 = vmatprep.mubr.f32.mxu0 %v315
    %407 = vmatmul.mubr.f32.gmra.mrb[0].mxu0 %v307
    %v408 = vpop.f32.mrb[0].mxu0
    %v409 = vadd.f32 %v291, %v408
    %v410 = vpop.f32.mrb[0].mxu0
    %v411 = vadd.f32 %v295, %v410
    %412 = vdwg.mxu0
    %413 = vmatprep.subr.mxu0 %v95
    %414 = vmatpush1.msra.mxu0 %v94
    %415 = vmatprep.subr.mxu0 %v97
    %416 = vmatpush1.msra.mxu0 %v96
    %417 = vmatprep.subr.mxu0 %v99
    %418 = vmatpush1.msra.mxu0 %v98
    %419 = vmatprep.subr.mxu0 %v101
    %420 = vmatpush1.msra.mxu0 %v100
    %421 = vmatprep.subr.mxu0 %v103
    %422 = vmatpush1.msra.mxu0 %v102
    %423 = vmatprep.subr.mxu0 %v105
    %424 = vmatpush1.msra.mxu0 %v104
    %425 = vmatprep.subr.mxu0 %v107
    %426 = vmatpush1.msra.mxu0 %v106
    %427 = vmatprep.subr.mxu0 %v109
    %428 = vmatpush1.msra.mxu0 %v108
    %429 = vmatprep.subr.mxu0 %v111
    %430 = vmatpush1.msra.mxu0 %v110
    %431 = vmatprep.subr.mxu0 %v113
    %432 = vmatpush1.msra.mxu0 %v112
    %433 = vmatprep.subr.mxu0 %v115
    %434 = vmatpush1.msra.mxu0 %v114
    %435 = vmatprep.subr.mxu0 %v117
    %436 = vmatpush1.msra.mxu0 %v116
    %437 = vmatprep.subr.mxu0 %v119
    %438 = vmatpush1.msra.mxu0 %v118
    %439 = vmatprep.subr.mxu0 %v121
    %440 = vmatpush1.msra.mxu0 %v120
    %441 = vmatprep.subr.mxu0 %v123
    %442 = vmatpush1.msra.mxu0 %v122
    %443 = vmatprep.subr.mxu0 %v125
    %444 = vmatpush1.msra.mxu0 %v124
    %445 = vmatprep.subr.mxu0 %v127
    %446 = vmatpush1.msra.mxu0 %v126
    %447 = vmatprep.subr.mxu0 %v129
    %448 = vmatpush1.msra.mxu0 %v128
    %449 = vmatprep.subr.mxu0 %v131
    %450 = vmatpush1.msra.mxu0 %v130
    %451 = vmatprep.subr.mxu0 %v133
    %452 = vmatpush1.msra.mxu0 %v132
    %453 = vmatprep.subr.mxu0 %v135
    %454 = vmatpush1.msra.mxu0 %v134
    %455 = vmatprep.subr.mxu0 %v137
    %456 = vmatpush1.msra.mxu0 %v136
    %457 = vmatprep.subr.mxu0 %v139
    %458 = vmatpush1.msra.mxu0 %v138
    %459 = vmatprep.subr.mxu0 %v141
    %460 = vmatpush1.msra.mxu0 %v140
    %461 = vmatprep.subr.mxu0 %v143
    %462 = vmatpush1.msra.mxu0 %v142
    %463 = vmatprep.subr.mxu0 %v145
    %464 = vmatpush1.msra.mxu0 %v144
    %465 = vmatprep.subr.mxu0 %v147
    %466 = vmatpush1.msra.mxu0 %v146
    %467 = vmatprep.subr.mxu0 %v149
    %468 = vmatpush1.msra.mxu0 %v148
    %469 = vmatprep.subr.mxu0 %v151
    %470 = vmatpush1.msra.mxu0 %v150
    %471 = vmatprep.subr.mxu0 %v153
    %472 = vmatpush1.msra.mxu0 %v152
    %473 = vmatprep.subr.mxu0 %v155
    %474 = vmatpush1.msra.mxu0 %v154
    %475 = vmatprep.subr.mxu0 %v157
    %476 = vmatpush1.msra.mxu0 %v156
    %477 = vmatprep.mubr.f32.mxu0 %v316
    %478 = vmatmul.mubr.f32.gmra.mrb[0].mxu0 %v314
    %v479 = vpop.f32.mrb[0].mxu0
    %v480 = vadd.f32 %v409, %v479
    %v481 = vpop.f32.mrb[0].mxu0
    %v482 = vadd.f32 %v411, %v481
    %483 = vdwg.mxu0
    %484 = vmatprep.subr.mxu0 %v159
    %485 = vmatpush1.msra.mxu0 %v158
    %486 = vmatprep.subr.mxu0 %v161
    %487 = vmatpush1.msra.mxu0 %v160
    %488 = vmatprep.subr.mxu0 %v163
    %489 = vmatpush1.msra.mxu0 %v162
    %490 = vmatprep.subr.mxu0 %v165
    %491 = vmatpush1.msra.mxu0 %v164
    %492 = vmatprep.subr.mxu0 %v167
    %493 = vmatpush1.msra.mxu0 %v166
    %494 = vmatprep.subr.mxu0 %v169
    %495 = vmatpush1.msra.mxu0 %v168
    %496 = vmatprep.subr.mxu0 %v171
    %497 = vmatpush1.msra.mxu0 %v170
    %498 = vmatprep.subr.mxu0 %v173
    %499 = vmatpush1.msra.mxu0 %v172
    %500 = vmatprep.subr.mxu0 %v175
    %501 = vmatpush1.msra.mxu0 %v174
    %502 = vmatprep.subr.mxu0 %v177
    %503 = vmatpush1.msra.mxu0 %v176
    %504 = vmatprep.subr.mxu0 %v179
    %505 = vmatpush1.msra.mxu0 %v178
    %506 = vmatprep.subr.mxu0 %v181
    %507 = vmatpush1.msra.mxu0 %v180
    %508 = vmatprep.subr.mxu0 %v183
    %509 = vmatpush1.msra.mxu0 %v182
    %510 = vmatprep.subr.mxu0 %v185
    %511 = vmatpush1.msra.mxu0 %v184
    %512 = vmatprep.subr.mxu0 %v187
    %513 = vmatpush1.msra.mxu0 %v186
    %514 = vmatprep.subr.mxu0 %v189
    %515 = vmatpush1.msra.mxu0 %v188
    %516 = vmatprep.subr.mxu0 %v191
    %517 = vmatpush1.msra.mxu0 %v190
    %518 = vmatprep.subr.mxu0 %v193
    %519 = vmatpush1.msra.mxu0 %v192
    %520 = vmatprep.subr.mxu0 %v195
    %521 = vmatpush1.msra.mxu0 %v194
    %522 = vmatprep.subr.mxu0 %v197
    %523 = vmatpush1.msra.mxu0 %v196
    %524 = vmatprep.subr.mxu0 %v199
    %525 = vmatpush1.msra.mxu0 %v198
    %526 = vmatprep.subr.mxu0 %v201
    %527 = vmatpush1.msra.mxu0 %v200
    %528 = vmatprep.subr.mxu0 %v203
    %529 = vmatpush1.msra.mxu0 %v202
    %530 = vmatprep.subr.mxu0 %v205
    %531 = vmatpush1.msra.mxu0 %v204
    %532 = vmatprep.subr.mxu0 %v207
    %533 = vmatpush1.msra.mxu0 %v206
    %534 = vmatprep.subr.mxu0 %v209
    %535 = vmatpush1.msra.mxu0 %v208
    %536 = vmatprep.subr.mxu0 %v211
    %537 = vmatpush1.msra.mxu0 %v210
    %538 = vmatprep.subr.mxu0 %v213
    %539 = vmatpush1.msra.mxu0 %v212
    %540 = vmatprep.subr.mxu0 %v215
    %541 = vmatpush1.msra.mxu0 %v214
    %542 = vmatprep.subr.mxu0 %v217
    %543 = vmatpush1.msra.mxu0 %v216
    %544 = vmatprep.subr.mxu0 %v219
    %545 = vmatpush1.msra.mxu0 %v218
    %546 = vmatprep.subr.mxu0 %v221
    %547 = vmatpush1.msra.mxu0 %v220
    %548 = vmatprep.mubr.f32.mxu0 %v332
    %549 = vmatmul.mubr.f32.gmra.mrb[0].mxu0 %v324
    %v550 = vpop.f32.mrb[0].mxu0
    %v551 = vadd.f32 %v480, %v550
    %v552 = vpop.f32.mrb[0].mxu0
    %v553 = vadd.f32 %v482, %v552
    %554 = vdwg.mxu0
    %555 = vmatprep.subr.mxu0 %v223
    %556 = vmatpush1.msra.mxu0 %v222
    %557 = vmatprep.subr.mxu0 %v225
    %558 = vmatpush1.msra.mxu0 %v224
    %559 = vmatprep.subr.mxu0 %v227
    %560 = vmatpush1.msra.mxu0 %v226
    %561 = vmatprep.subr.mxu0 %v229
    %562 = vmatpush1.msra.mxu0 %v228
    %563 = vmatprep.subr.mxu0 %v231
    %564 = vmatpush1.msra.mxu0 %v230
    %565 = vmatprep.subr.mxu0 %v233
    %566 = vmatpush1.msra.mxu0 %v232
    %567 = vmatprep.subr.mxu0 %v235
    %568 = vmatpush1.msra.mxu0 %v234
    %569 = vmatprep.subr.mxu0 %v237
    %570 = vmatpush1.msra.mxu0 %v236
    %571 = vmatprep.subr.mxu0 %v239
    %572 = vmatpush1.msra.mxu0 %v238
    %573 = vmatprep.subr.mxu0 %v241
    %574 = vmatpush1.msra.mxu0 %v240
    %575 = vmatprep.subr.mxu0 %v243
    %576 = vmatpush1.msra.mxu0 %v242
    %577 = vmatprep.subr.mxu0 %v245
    %578 = vmatpush1.msra.mxu0 %v244
    %579 = vmatprep.subr.mxu0 %v247
    %580 = vmatpush1.msra.mxu0 %v246
    %581 = vmatprep.subr.mxu0 %v249
    %582 = vmatpush1.msra.mxu0 %v248
    %583 = vmatprep.subr.mxu0 %v251
    %584 = vmatpush1.msra.mxu0 %v250
    %585 = vmatprep.subr.mxu0 %v253
    %586 = vmatpush1.msra.mxu0 %v252
    %587 = vmatprep.subr.mxu0 %v255
    %588 = vmatpush1.msra.mxu0 %v254
    %589 = vmatprep.subr.mxu0 %v257
    %590 = vmatpush1.msra.mxu0 %v256
    %591 = vmatprep.subr.mxu0 %v259
    %592 = vmatpush1.msra.mxu0 %v258
    %593 = vmatprep.subr.mxu0 %v261
    %594 = vmatpush1.msra.mxu0 %v260
    %595 = vmatprep.subr.mxu0 %v263
    %596 = vmatpush1.msra.mxu0 %v262
    %597 = vmatprep.subr.mxu0 %v265
    %598 = vmatpush1.msra.mxu0 %v264
    %599 = vmatprep.subr.mxu0 %v267
    %600 = vmatpush1.msra.mxu0 %v266
    %601 = vmatprep.subr.mxu0 %v269
    %602 = vmatpush1.msra.mxu0 %v268
    %603 = vmatprep.subr.mxu0 %v271
    %604 = vmatpush1.msra.mxu0 %v270
    %605 = vmatprep.subr.mxu0 %v273
    %606 = vmatpush1.msra.mxu0 %v272
    %607 = vmatprep.subr.mxu0 %v275
    %608 = vmatpush1.msra.mxu0 %v274
    %609 = vmatprep.subr.mxu0 %v277
    %610 = vmatpush1.msra.mxu0 %v276
    %611 = vmatprep.subr.mxu0 %v279
    %612 = vmatpush1.msra.mxu0 %v278
    %613 = vmatprep.subr.mxu0 %v281
    %614 = vmatpush1.msra.mxu0 %v280
    %615 = vmatprep.subr.mxu0 %v283
    %616 = vmatpush1.msra.mxu0 %v282
    %617 = vmatprep.subr.mxu0 %v285
    %618 = vmatpush1.msra.mxu0 %v284
    %619 = vmatprep.mubr.f32.mxu0 %v333
    %620 = vmatmul.mubr.f32.gmra.mrb[0].mxu0 %v331
    %v621 = vpop.f32.mrb[0].mxu0
    %v622 = vadd.f32 %v551, %v621
    %v623 = vpop.f32.mrb[0].mxu0
    %v624 = vadd.f32 %v553, %v623
    %625 = vdwg.mxu0
    %v628 = vcombine.low %v622, %v624
    %v630 = vunpack.c.l.s4 1983009808
    %v631 = vunpack.c.0.s8 %v630
    %v632 = vlaneseq
    %v633 = vshrl.u32 %v632, 7
    %v634 = vsub.s32 %v631, %v633
    %v635 = vrot.slane %v628, %v634
    %637 = vst [vmem:[%s3] sm:$0xf] %v635
    // Predicated region
    $region18: #{roi_to_gcn_feature_mapper.1} parent=1 // pred_check
      _
    $region19: #{roi_to_gcn_feature_mapper.1} parent=1 // pred_check_branch
      %639 = sbr.rel (0) target = $region21
    $region20: #{roi_to_gcn_feature_mapper.1} parent=1 // pred_region
      _
    $region21: #{roi_to_gcn_feature_mapper.1} parent=1 // pred_fallthru
      _
    // Predicated region
    $region22: #{roi_to_gcn_feature_mapper.1} parent=1 // pred_check
      _
    $region23: #{roi_to_gcn_feature_mapper.1} parent=1 // pred_check_branch
      %641 = sbr.rel (0) target = $region25
    $region24: #{roi_to_gcn_feature_mapper.1} parent=1 // pred_region
      _
    $region25: #{roi_to_gcn_feature_mapper.1} parent=1 // pred_fallthru
      _
    %642 = vsyncpa [#allocation3], 1

</llo_original>
